<compile_context>
chip_gen: v7x
topology: tpu7x:2x2x1
jax: 0.10.0
libtpu: 0.0.40
codegen_flags: <defaults>
</compile_context>

<pallas_src>
import functools

import jax
import jax.numpy as jnp
from jax.experimental import pallas as pl
from jax.experimental.pallas import tpu as pltpu


# ----------------------------- Pallas kernel --------------------------------
def _phrase_embed_kernel(inv_lens_ref, emb_ref, wproj_ref, whw_ref, bhw_ref,
                         out_ref):
    """Project + fused 2-layer highway on the merged (W*TN) batch, then
    length-normalized sum over the word axis.

    inv_lens_ref : (TN, 1)        f32   # 1 / (non-pad words per phrase)
    emb_ref      : (W, TN, Ep)    bf16  # pre-gathered word embeddings (lane-padded)
    wproj_ref    : (Ep, Hp)       bf16  # projection, no bias (lane-padded)
    whw_ref      : (2, Hp, 2*Hp)  bf16  # per-layer fused [gate | transform] weights
    bhw_ref      : (2, 1, 2*Hp)   f32   # per-layer fused [gate | transform] biases
    out_ref      : (TN, Hp)       bf16  # phrase vectors (padded lanes are zero)
    """
    W, TN, Ep = emb_ref.shape
    Hp = out_ref.shape[-1]

    # Hoist all weight/bias loads (each used once below).
    wproj = wproj_ref[...]
    whw0, whw1 = whw_ref[0], whw_ref[1]
    bhw0, bhw1 = bhw_ref[0], bhw_ref[1]

    # Word axis fused into M: one matmul chain with M = W*TN keeps the MXU
    # pipeline full (no per-word push/drain bubbles).
    x = jnp.dot(emb_ref[...].reshape(W * TN, Ep), wproj,
                preferred_element_type=jnp.float32)                # (W*TN, Hp) f32
    for whw_l, bhw_l in ((whw0, bhw0), (whw1, bhw1)):              # 2 highway layers
        gt = jnp.dot(x.astype(jnp.bfloat16), whw_l,
                     preferred_element_type=jnp.float32) + bhw_l   # (W*TN, 2Hp)
        g = jax.nn.sigmoid(gt[:, :Hp])
        t = jnp.maximum(gt[:, Hp:], 0.0)
        x = x + g * (t - x)                                        # == g*t + (1-g)*x

    sums = jnp.sum(x.reshape(W, TN, Hp), axis=0)                   # (TN, Hp) f32
    # inv_lens is exact 1/len (inf for fully-padded phrases, matching torch).
    out_ref[...] = (inv_lens_ref[...] * sums).astype(out_ref.dtype)


# ----------------------------- wrapper glue ----------------------------------
def _round_up(x, m):
    return (x + m - 1) // m * m


def _choose_tile_and_vmem(n, w, ep, hp):
    """Pick the phrase tile TN (multiple of 32) and a matching vmem limit.

    Footprint model: double-buffered emb/out blocks + resident weights +
    the f32 highway intermediates that grow with W*TN.  Budget is chosen so
    the same tile is safe on v7x (64 MiB VMEM) while still large on v5e/v6e.
    """
    def footprint(tn):
        emb = w * tn * ep * 2 * 2                      # bf16, 2 buffers
        out = tn * hp * 2 * 2                          # bf16, 2 buffers
        lens = tn * 4 * 2                              # f32 (TN,1), 2 buffers
        weights = ep * hp * 2 + 2 * hp * (2 * hp) * 2 + 2 * (2 * hp) * 4
        inter = w * tn * (2 * hp * 4 + 2 * hp * 4)     # x (+updated x) and gt, f32
        return emb + out + lens + weights + inter

    budget = 40 * 1024 * 1024
    tn = 2048
    while tn > 32 and footprint(tn) > budget:
        tn //= 2
    if n > 32:
        # Keep >= 2 grid steps when possible so v7x's two TensorCores both
        # get work ("parallel" grid axis); harmless single-TC on v5e/v6e.
        tn = min(tn, _round_up(pl.cdiv(n, 2), 32))
    tn = max(32, min(tn, _round_up(n, 32)))
    vmem_limit = int(min(max(footprint(tn) * 2 + (4 << 20), 32 << 20), 64 << 20))
    return tn, vmem_limit


def _prepare_params(params):
    """Pad to 128-lane-dense shapes, cast matmul weights to bf16, fuse highway."""
    wv, wproj = params["wv"], params["wproj"]
    wg, bg, wt, bt = params["wg"], params["bg"], params["wt"], params["bt"]
    V, E = wv.shape
    H = wproj.shape[1]
    Ep = max(_round_up(E, 128), 128)
    Hp = max(_round_up(H, 128), 128)

    wv_p = jnp.zeros((V, Ep), jnp.bfloat16).at[:, :E].set(wv.astype(jnp.bfloat16))
    wproj_p = jnp.zeros((Ep, Hp), jnp.bfloat16).at[:E, :H].set(
        wproj.astype(jnp.bfloat16))
    # Fused [gate | transform] weights/biases per highway layer; zero padding
    # keeps padded lanes exactly zero through the highway (g=0.5, t=0, x=0).
    whw = jnp.zeros((2, Hp, 2 * Hp), jnp.bfloat16)
    whw = whw.at[:, :H, :H].set(wg.astype(jnp.bfloat16))
    whw = whw.at[:, :H, Hp:Hp + H].set(wt.astype(jnp.bfloat16))
    bhw = jnp.zeros((2, 1, 2 * Hp), jnp.float32)
    bhw = bhw.at[:, :, :H].set(bg.astype(jnp.float32))
    bhw = bhw.at[:, :, Hp:Hp + H].set(bt.astype(jnp.float32))
    return {"wv": wv_p, "wproj": wproj_p, "whw": whw, "bhw": bhw,
            "H": H, "Hp": Hp, "Ep": Ep}


def _phrase_vectors(idxs_flat, prep):
    """idxs_flat: (N, W) int32 -> (N, H) bfloat16 phrase vectors."""
    N, W = idxs_flat.shape
    Ep, Hp, H = prep["Ep"], prep["Hp"], prep["H"]

    TN, vmem_limit = _choose_tile_and_vmem(N, W, Ep, Hp)
    n_tiles = pl.cdiv(N, TN)
    Np = n_tiles * TN

    # 1 / phrase_len computed in the wrapper (inf for fully-padded phrases,
    # matching torch); pad rows get 0 (their output rows are sliced off anyway).
    lens = jnp.sum((idxs_flat != 0).astype(jnp.float32), axis=-1, keepdims=True)
    inv_lens = jnp.pad(1.0 / lens, ((0, Np - N), (0, 0)))

    # Pre-gather embeddings (XLA HBM gather, bf16) so the vocab table never
    # enters VMEM; layout (W, Np, Ep) so the kernel reads one clean 3-D slab.
    # NOTE: out-of-range indices are clamped (torch nn.Embedding would raise).
    idx_t = jnp.pad(idxs_flat, ((0, Np - N), (0, 0))).T                # (W, Np)
    emb = jnp.take(prep["wv"], idx_t, axis=0)                          # (W, Np, Ep)

    out = pl.pallas_call(
        _phrase_embed_kernel,
        out_shape=jax.ShapeDtypeStruct((Np, Hp), jnp.bfloat16),
        grid=(n_tiles,),
        in_specs=[
            pl.BlockSpec((TN, 1), lambda i: (i, 0)),             # 1/phrase_len
            pl.BlockSpec((W, TN, Ep), lambda i: (0, i, 0)),      # embeddings (tiled)
            pl.BlockSpec((Ep, Hp), lambda i: (0, 0)),            # projection
            pl.BlockSpec((2, Hp, 2 * Hp), lambda i: (0, 0, 0)),  # fused highway W
            pl.BlockSpec((2, 1, 2 * Hp), lambda i: (0, 0, 0)),   # fused highway b
        ],
        out_specs=pl.BlockSpec((TN, Hp), lambda i: (i, 0)),
        compiler_params=pltpu.CompilerParams(
            dimension_semantics=("parallel",),
            vmem_limit_bytes=vmem_limit),
    )(inv_lens, emb, prep["wproj"], prep["whw"], prep["bhw"])
    return out[:N, :H]


def paraphraser_forward(params, q_phrase_idxs, q_phrase_types, rw_idxs):
    """Mirror of Paraphraser.forward.

    Returns (main_out, q_phrase_vectors, rw_phrase_vectors); main_out equals
    the PyTorch module's return value q_phrase_idxs.reshape(batch, -1).
    q_phrase_types is unused, exactly as in the PyTorch forward.
    Phrase vectors are bf16 (weights/compute use bf16 inputs, f32 accumulation).
    """
    del q_phrase_types  # unused in compute (only printed in the torch code)
    prep = _prepare_params(params)
    H = prep["H"]

    B, P, Wq = q_phrase_idxs.shape
    Br, T, C, Wr = rw_idxs.shape
    q_flat = q_phrase_idxs.reshape(B * P, Wq).astype(jnp.int32)
    rw_flat = rw_idxs.reshape(Br * T * C, Wr).astype(jnp.int32)

    if Wq == Wr:
        # Single pallas_call for both phrase batches: one pipeline ramp-up,
        # weights resident once.
        both = jnp.concatenate([q_flat, rw_flat], axis=0)
        vec = _phrase_vectors(both, prep)
        q_vec, rw_vec = vec[:B * P], vec[B * P:]
    else:
        q_vec = _phrase_vectors(q_flat, prep)
        rw_vec = _phrase_vectors(rw_flat, prep)

    q_phrase_vectors = q_vec.reshape(B, P, H)
    rw_phrase_vectors = rw_vec.reshape(Br, T, C, H)
    main_out = q_phrase_idxs.reshape(B, -1)  # the module's actual return
    return main_out, q_phrase_vectors, rw_phrase_vectors


# ----------------------------- pure-JAX reference ----------------------------
def _reference_phrase_vectors(idxs_flat, prep):
    """Same math (same bf16 padded weights) in plain jnp, for a plumbing check."""
    Hp, H = prep["Hp"], prep["H"]
    lens = jnp.sum((idxs_flat != 0).astype(jnp.float32), axis=-1)     # (N,)
    emb = jnp.take(prep["wv"], idxs_flat, axis=0)                     # (N, W, Ep)
    x = jnp.dot(emb, prep["wproj"], preferred_element_type=jnp.float32)
    for l in range(2):
        gt = jnp.dot(x.astype(jnp.bfloat16), prep["whw"][l],
                     preferred_element_type=jnp.float32) + prep["bhw"][l]
        g = jax.nn.sigmoid(gt[..., :Hp])
        t = jnp.maximum(gt[..., Hp:], 0.0)
        x = g * t + (1.0 - g) * x
    sums = x.sum(axis=1)                                              # (N, Hp)
    return ((1.0 / lens)[:, None] * sums)[:, :H]


# ----------------------------- demo / test -----------------------------------
def _init_params(key, vocab, embed_dim, hidden):
    ks = jax.random.split(key, 6)
    wv = 0.1 * jax.random.normal(ks[0], (vocab, embed_dim), jnp.float32)
    wv = wv.at[0].set(0.0)  # pad row, like pretrained word vectors
    return {
        "wv": wv,
        "wproj": 0.1 * jax.random.normal(ks[1], (embed_dim, hidden), jnp.float32),
        "wg": 0.1 * jax.random.normal(ks[2], (2, hidden, hidden), jnp.float32),
        "bg": 0.1 * jax.random.normal(ks[3], (2, 1, hidden), jnp.float32),
        "wt": 0.1 * jax.random.normal(ks[4], (2, hidden, hidden), jnp.float32),
        "bt": 0.1 * jax.random.normal(ks[5], (2, 1, hidden), jnp.float32),
    }


if __name__ == "__main__":
    key = jax.random.PRNGKey(0)
    V, E, H = 128, 32, 32         # vocab, word-vector dim, hidden_size
    B, P, W = 2, 8, 3             # batch, max phrases per question, words per phrase
    T, C = 4, 5                   # phrase types, candidate replacement phrases

    k_param, k_q, k_rw, _ = jax.random.split(key, 4)
    params = _init_params(k_param, V, E, H)

    # q_phrase_idxs: padded with 0s; ensure first word of each phrase nonzero
    # so lengths are >= 1 (fully padded rows would give inf, matching torch).
    q_phrase_idxs = jax.random.randint(k_q, (B, P, W), 0, V, dtype=jnp.int32)
    q_phrase_idxs = q_phrase_idxs.at[..., 0].set(
        jnp.maximum(q_phrase_idxs[..., 0], 1))
    q_phrase_types = jnp.zeros((B, P, 1), jnp.int32)  # unused by forward compute
    rw_idxs = jax.random.randint(k_rw, (B, T, C, W), 1, V, dtype=jnp.int32)

    fwd = jax.jit(functools.partial(paraphraser_forward, params))
    main_out, q_vecs, rw_vecs = fwd(q_phrase_idxs, q_phrase_types, rw_idxs)
    jax.block_until_ready((main_out, q_vecs, rw_vecs))

    assert main_out.shape == (B, P * W) and main_out.dtype == q_phrase_idxs.dtype
    assert q_vecs.shape == (B, P, H)
    assert rw_vecs.shape == (B, T, C, H)

    # Correctness check against a pure-JAX reference using the same bf16 weights
    # (kernel output is bf16, hence the 2e-2 tolerance).
    prep = _prepare_params(params)
    q_ref = _reference_phrase_vectors(
        q_phrase_idxs.reshape(B * P, W), prep).reshape(B, P, H)
    rw_ref = _reference_phrase_vectors(
        rw_idxs.reshape(B * T * C, W), prep).reshape(B, T, C, H)
    assert bool(jnp.allclose(q_vecs.astype(jnp.float32), q_ref,
                             rtol=2e-2, atol=2e-2))
    assert bool(jnp.allclose(rw_vecs.astype(jnp.float32), rw_ref,
                             rtol=2e-2, atol=2e-2))

    print("KERNEL_OK")
</pallas_src>

<mosaic_0001>
module attributes {stable_mosaic.version = 11 : i64} {
  func.func @_phrase_embed_kernel(%arg0: i32, %arg1: memref<32x1xf32, #tpu.memory_space<vmem>>, %arg2: memref<3x32x128xbf16, #tpu.memory_space<vmem>>, %arg3: memref<128x128xbf16, #tpu.memory_space<vmem>>, %arg4: memref<2x128x256xbf16, #tpu.memory_space<vmem>>, %arg5: memref<2x1x256xf32, #tpu.memory_space<vmem>>, %arg6: memref<32x128xbf16, #tpu.memory_space<vmem>>) attributes {dimension_semantics = [#tpu.dimension_semantics<parallel>], iteration_bounds = array<i64: 2>, scalar_prefetch = 0 : i64, scratch_operands = 0 : i64, tpu.core_type = #tpu.core_type<tc>, window_params = [{transform_indices = @transform_0, window_bounds = array<i64: 32, 1>}, {transform_indices = @transform_1, window_bounds = array<i64: 3, 32, 128>}, {pipeline_mode = #tpu.pipeline_mode<synchronous>, transform_indices = @transform_2, window_bounds = array<i64: 128, 128>}, {pipeline_mode = #tpu.pipeline_mode<synchronous>, transform_indices = @transform_3, window_bounds = array<i64: 2, 128, 256>}, {pipeline_mode = #tpu.pipeline_mode<synchronous>, transform_indices = @transform_4, window_bounds = array<i64: 2, 1, 256>}, {transform_indices = @transform_5, window_bounds = array<i64: 32, 128>}]} {
    %c0 = arith.constant 0 : index
    %c0_0 = arith.constant 0 : index
    %0 = vector.load %arg3[%c0, %c0_0] : memref<128x128xbf16, #tpu.memory_space<vmem>>, vector<128x128xbf16>
    %c0_1 = arith.constant 0 : index
    %c0_2 = arith.constant 0 : index
    %c0_3 = arith.constant 0 : index
    %1 = vector.load %arg4[%c0_1, %c0_2, %c0_3] : memref<2x128x256xbf16, #tpu.memory_space<vmem>>, vector<1x128x256xbf16>
    %2 = vector.shape_cast %1 : vector<1x128x256xbf16> to vector<128x256xbf16>
    %c1 = arith.constant 1 : index
    %c0_4 = arith.constant 0 : index
    %c0_5 = arith.constant 0 : index
    %3 = vector.load %arg4[%c1, %c0_4, %c0_5] : memref<2x128x256xbf16, #tpu.memory_space<vmem>>, vector<1x128x256xbf16>
    %4 = vector.shape_cast %3 : vector<1x128x256xbf16> to vector<128x256xbf16>
    %c0_6 = arith.constant 0 : index
    %c0_7 = arith.constant 0 : index
    %c0_8 = arith.constant 0 : index
    %5 = vector.load %arg5[%c0_6, %c0_7, %c0_8] : memref<2x1x256xf32, #tpu.memory_space<vmem>>, vector<1x1x256xf32>
    %6 = vector.shape_cast %5 : vector<1x1x256xf32> to vector<1x256xf32>
    %c1_9 = arith.constant 1 : index
    %c0_10 = arith.constant 0 : index
    %c0_11 = arith.constant 0 : index
    %7 = vector.load %arg5[%c1_9, %c0_10, %c0_11] : memref<2x1x256xf32, #tpu.memory_space<vmem>>, vector<1x1x256xf32>
    %8 = vector.shape_cast %7 : vector<1x1x256xf32> to vector<1x256xf32>
    %c0_12 = arith.constant 0 : index
    %c0_13 = arith.constant 0 : index
    %c0_14 = arith.constant 0 : index
    %9 = vector.load %arg2[%c0_12, %c0_13, %c0_14] : memref<3x32x128xbf16, #tpu.memory_space<vmem>>, vector<3x32x128xbf16>
    %10 = vector.shape_cast %9 : vector<3x32x128xbf16> to vector<96x128xbf16>
    %cst = arith.constant dense<0.000000e+00> : vector<96x128xf32>
    %11 = tpu.matmul %10, %0, %cst {dimension_numbers = #tpu.dot_dimension_numbers<[1], [0], [0], [1], [0, 0, 1, 1], [], []>} : vector<96x128xbf16>, vector<128x128xbf16>, vector<96x128xf32> -> vector<96x128xf32>
    %12 = arith.truncf %11 : vector<96x128xf32> to vector<96x128xbf16>
    %cst_15 = arith.constant dense<0.000000e+00> : vector<96x256xf32>
    %13 = tpu.matmul %12, %2, %cst_15 {dimension_numbers = #tpu.dot_dimension_numbers<[1], [0], [0], [1], [0, 0, 1, 1], [], []>} : vector<96x128xbf16>, vector<128x256xbf16>, vector<96x256xf32> -> vector<96x256xf32>
    %14 = vector.broadcast %6 : vector<1x256xf32> to vector<96x256xf32>
    %15 = arith.addf %13, %14 : vector<96x256xf32>
    %16 = vector.extract_strided_slice %15 {offsets = [0, 0], sizes = [96, 128], strides = [1, 1]} : vector<96x256xf32> to vector<96x128xf32>
    %17 = arith.negf %16 : vector<96x128xf32>
    %18 = math.exp %17 : vector<96x128xf32>
    %cst_16 = arith.constant 1.000000e+00 : f32
    %19 = vector.broadcast %cst_16 : f32 to vector<96x128xf32>
    %20 = arith.addf %19, %18 : vector<96x128xf32>
    %21 = arith.divf %19, %20 : vector<96x128xf32>
    %22 = vector.extract_strided_slice %15 {offsets = [0, 128], sizes = [96, 128], strides = [1, 1]} : vector<96x256xf32> to vector<96x128xf32>
    %cst_17 = arith.constant 0.000000e+00 : f32
    %23 = vector.broadcast %cst_17 : f32 to vector<96x128xf32>
    %24 = arith.maximumf %22, %23 : vector<96x128xf32>
    %25 = arith.subf %24, %11 : vector<96x128xf32>
    %26 = arith.mulf %21, %25 : vector<96x128xf32>
    %27 = arith.addf %11, %26 : vector<96x128xf32>
    %28 = arith.truncf %27 : vector<96x128xf32> to vector<96x128xbf16>
    %cst_18 = arith.constant dense<0.000000e+00> : vector<96x256xf32>
    %29 = tpu.matmul %28, %4, %cst_18 {dimension_numbers = #tpu.dot_dimension_numbers<[1], [0], [0], [1], [0, 0, 1, 1], [], []>} : vector<96x128xbf16>, vector<128x256xbf16>, vector<96x256xf32> -> vector<96x256xf32>
    %30 = vector.broadcast %8 : vector<1x256xf32> to vector<96x256xf32>
    %31 = arith.addf %29, %30 : vector<96x256xf32>
    %32 = vector.extract_strided_slice %31 {offsets = [0, 0], sizes = [96, 128], strides = [1, 1]} : vector<96x256xf32> to vector<96x128xf32>
    %33 = arith.negf %32 : vector<96x128xf32>
    %34 = math.exp %33 : vector<96x128xf32>
    %cst_19 = arith.constant 1.000000e+00 : f32
    %35 = vector.broadcast %cst_19 : f32 to vector<96x128xf32>
    %36 = arith.addf %35, %34 : vector<96x128xf32>
    %37 = arith.divf %35, %36 : vector<96x128xf32>
    %38 = vector.extract_strided_slice %31 {offsets = [0, 128], sizes = [96, 128], strides = [1, 1]} : vector<96x256xf32> to vector<96x128xf32>
    %cst_20 = arith.constant 0.000000e+00 : f32
    %39 = vector.broadcast %cst_20 : f32 to vector<96x128xf32>
    %40 = arith.maximumf %38, %39 : vector<96x128xf32>
    %41 = arith.subf %40, %27 : vector<96x128xf32>
    %42 = arith.mulf %37, %41 : vector<96x128xf32>
    %43 = arith.addf %27, %42 : vector<96x128xf32>
    %44 = vector.shape_cast %43 : vector<96x128xf32> to vector<3x32x128xf32>
    %cst_21 = arith.constant dense<0.000000e+00> : vector<32x128xf32>
    %45 = vector.multi_reduction <add>, %44, %cst_21 [0] : vector<3x32x128xf32> to vector<32x128xf32>
    %c0_22 = arith.constant 0 : index
    %c0_23 = arith.constant 0 : index
    %46 = vector.load %arg1[%c0_22, %c0_23] : memref<32x1xf32, #tpu.memory_space<vmem>>, vector<32x1xf32>
    %47 = vector.broadcast %46 : vector<32x1xf32> to vector<32x128xf32>
    %48 = arith.mulf %47, %45 : vector<32x128xf32>
    %49 = arith.truncf %48 : vector<32x128xf32> to vector<32x128xbf16>
    %c0_24 = arith.constant 0 : index
    %c0_25 = arith.constant 0 : index
    %50 = vector.load %arg6[%c0_24, %c0_25] : memref<32x128xbf16, #tpu.memory_space<vmem>>, vector<32x128xbf16>
    tpu.vector_store %arg6[%c0_24, %c0_25], %49 {strides = array<i32>} : memref<32x128xbf16, #tpu.memory_space<vmem>>, vector<32x128xbf16>,
    return
  }
  func.func @transform_0(%arg0: i32) -> (i32, i32) {
    %c0_i32 = arith.constant 0 : i32
    %c0_i32_0 = arith.constant 0 : i32
    return %arg0, %c0_i32 : i32, i32
  }
  func.func @transform_1(%arg0: i32) -> (i32, i32, i32) {
    %c0_i32 = arith.constant 0 : i32
    %c0_i32_0 = arith.constant 0 : i32
    %c0_i32_1 = arith.constant 0 : i32
    return %c0_i32, %arg0, %c0_i32_0 : i32, i32, i32
  }
  func.func @transform_2(%arg0: i32) -> (i32, i32) {
    %c0_i32 = arith.constant 0 : i32
    %c0_i32_0 = arith.constant 0 : i32
    %c0_i32_1 = arith.constant 0 : i32
    return %c0_i32, %c0_i32_0 : i32, i32
  }
  func.func @transform_3(%arg0: i32) -> (i32, i32, i32) {
    %c0_i32 = arith.constant 0 : i32
    %c0_i32_0 = arith.constant 0 : i32
    %c0_i32_1 = arith.constant 0 : i32
    %c0_i32_2 = arith.constant 0 : i32
    return %c0_i32, %c0_i32_0, %c0_i32_1 : i32, i32, i32
  }
  func.func @transform_4(%arg0: i32) -> (i32, i32, i32) {
    %c0_i32 = arith.constant 0 : i32
    %c0_i32_0 = arith.constant 0 : i32
    %c0_i32_1 = arith.constant 0 : i32
    %c0_i32_2 = arith.constant 0 : i32
    return %c0_i32, %c0_i32_0, %c0_i32_1 : i32, i32, i32
  }
  func.func @transform_5(%arg0: i32) -> (i32, i32) {
    %c0_i32 = arith.constant 0 : i32
    %c0_i32_0 = arith.constant 0 : i32
    return %arg0, %c0_i32 : i32, i32
  }
}

</mosaic_0001>

<llo_original>
// kernel: paraphraser_forward.1
$region0: #{paraphraser_forward.1}
  #allocation0 [shape = 'u32[]', space=smem, size = 0x4, offset = 0x4, fixed_abs, tag = 'smem constant byte address 0x4 - core index']
  #allocation1 [shape = 'u32[144,128]{1,0:T(1,128)}', space=vmem, size = 0x12000, scoped, tag = 'internal scratch']
  %s0 = inlined_call_operand.vmem [shape: f32[64,1], index: 0, kind: input, shape index: {}]
  %s1 = inlined_call_operand.vmem [shape: bf16[3,64,128], index: 1, kind: input, shape index: {}]
  %s2 = inlined_call_operand.vmem [shape: bf16[128,128], index: 2, kind: input, shape index: {}]
  %s3 = inlined_call_operand.vmem [shape: bf16[2,128,256], index: 3, kind: input, shape index: {}]
  %s4 = inlined_call_operand.vmem [shape: f32[2,1,256], index: 4, kind: input, shape index: {}]
  %s5 = inlined_call_operand.vmem [shape: bf16[64,128], index: 5, kind: output, shape index: {}]
  %s6 = sld [smem:[#allocation0]]
  $region94: #{paraphraser_forward.1} parent=0
    _
  %s8 = ssub.s32 1, %s6
  %s9 = scalar_select 0, %s8, %s6
  $region1: #{paraphraser_forward.1} parent=0
    #allocation2 [shape = 'u8[49152]{0}', space=vmem, size = 0xc000, scoped, tag = 'input window, operand 1']
    loop: start=0, step=1, limit=4
    $region2: #{paraphraser_forward.1} parent=1 // loop_pre_header
      _
    $region3: #{paraphraser_forward.1} parent=1 // loop_header
      %s11 = sphi 0, %s15
      %p12 = scmp.ge.s32.totalorder %s11, 4
      %s21 = sphi 0, %s23
      %s24 = sphi 0, %s21
      %s25 = sphi 0, %s24
      %s41 = sphi 0, %s25
      %s47 = sphi 0, %s49
      %s50 = sphi 0, %s47
      %s51 = sphi 0, %s50
      %s67 = sphi 0, %s51
      %s71 = sphi 0, %s71
      %s73 = sphi 0, %s71
      %s74 = sphi 0, %s73
      %s88 = sphi 0, %s74
      %s92 = sphi 0, %s92
      %s94 = sphi 0, %s92
      %s95 = sphi 0, %s94
      %s109 = sphi 0, %s95
      %s113 = sphi 0, %s113
      %s115 = sphi 0, %s113
      %s116 = sphi 0, %s115
      %s130 = sphi 0, %s116
      %s136 = sphi 0, %s138
      %s139 = sphi 0, %s136
      %s140 = sphi 0, %s139
      %s156 = sphi 0, %s140
    $region4: #{paraphraser_forward.1} parent=1 // loop_header_branch
      %14 = sbr.rel (%p12) target = $region8
    $region5: #{paraphraser_forward.1} parent=1 // loop_body
      %s16 = ssub.s32 %s11, 1
      %s17 = ssub.s32 %s11, 2
      %s18 = sadd.s32 %s11, 1
      %s19 = ssub.s32 %s11, %s18
      %p20 = scmp.eq.s32.totalorder %s19, 0
      %s22 = sadd.s32 %s21, 1
      %s23 = scalar_select %p20, %s21, %s22
      %p26 = pneg %p20
      %p27 = scmp.eq.s32.totalorder %s11, 1
      %p28 = por %p26, %p27
      %p29 = scmp.ne.s32.totalorder %s21, %s24
      %p30 = scmp.eq.s32.totalorder %s11, 0
      %p31 = por %p29, %p30
      %p32 = scmp.ne.s32.totalorder %s21, %s24
      %p33 = scmp.eq.s32.totalorder %s16, 1
      %p34 = por %p32, %p33
      %p35 = scmp.ne.s32.totalorder %s24, %s25
      %p36 = scmp.eq.s32.totalorder %s16, 0
      %p37 = por %p35, %p36
      %p38 = scmp.ne.s32.totalorder %s24, %s25
      %p39 = scmp.eq.s32.totalorder %s17, 1
      %p40 = por %p38, %p39
      %p42 = scmp.ne.s32.totalorder %s25, %s41
      %p43 = scmp.eq.s32.totalorder %s17, 0
      %p44 = por %p42, %p43
      %s45 = ssub.s32 %s11, %s18
      %p46 = scmp.eq.s32.totalorder %s45, 0
      %s48 = sadd.s32 %s47, 1
      %s49 = scalar_select %p46, %s47, %s48
      %p52 = pneg %p46
      %p53 = scmp.eq.s32.totalorder %s11, 1
      %p54 = por %p52, %p53
      %p55 = scmp.ne.s32.totalorder %s47, %s50
      %p56 = scmp.eq.s32.totalorder %s11, 0
      %p57 = por %p55, %p56
      %p58 = scmp.ne.s32.totalorder %s47, %s50
      %p59 = scmp.eq.s32.totalorder %s16, 1
      %p60 = por %p58, %p59
      %p61 = scmp.ne.s32.totalorder %s50, %s51
      %p62 = scmp.eq.s32.totalorder %s16, 0
      %p63 = por %p61, %p62
      %p64 = scmp.ne.s32.totalorder %s50, %s51
      %p65 = scmp.eq.s32.totalorder %s17, 1
      %p66 = por %p64, %p65
      %p68 = scmp.ne.s32.totalorder %s51, %s67
      %p69 = scmp.eq.s32.totalorder %s17, 0
      %p70 = por %p68, %p69
      %s72 = sadd.s32 %s71, 1
      %p75 = scmp.eq.s32.totalorder %s11, 1
      %p76 = scmp.ne.s32.totalorder %s71, %s73
      %p77 = scmp.eq.s32.totalorder %s11, 0
      %p78 = por %p76, %p77
      %p79 = scmp.ne.s32.totalorder %s71, %s73
      %p80 = scmp.eq.s32.totalorder %s16, 1
      %p81 = por %p79, %p80
      %p82 = scmp.ne.s32.totalorder %s73, %s74
      %p83 = scmp.eq.s32.totalorder %s16, 0
      %p84 = por %p82, %p83
      %p85 = scmp.ne.s32.totalorder %s73, %s74
      %p86 = scmp.eq.s32.totalorder %s17, 1
      %p87 = por %p85, %p86
      %p89 = scmp.ne.s32.totalorder %s74, %s88
      %p90 = scmp.eq.s32.totalorder %s17, 0
      %p91 = por %p89, %p90
      %s93 = sadd.s32 %s92, 1
      %p96 = scmp.eq.s32.totalorder %s11, 1
      %p97 = scmp.ne.s32.totalorder %s92, %s94
      %p98 = scmp.eq.s32.totalorder %s11, 0
      %p99 = por %p97, %p98
      %p100 = scmp.ne.s32.totalorder %s92, %s94
      %p101 = scmp.eq.s32.totalorder %s16, 1
      %p102 = por %p100, %p101
      %p103 = scmp.ne.s32.totalorder %s94, %s95
      %p104 = scmp.eq.s32.totalorder %s16, 0
      %p105 = por %p103, %p104
      %p106 = scmp.ne.s32.totalorder %s94, %s95
      %p107 = scmp.eq.s32.totalorder %s17, 1
      %p108 = por %p106, %p107
      %p110 = scmp.ne.s32.totalorder %s95, %s109
      %p111 = scmp.eq.s32.totalorder %s17, 0
      %p112 = por %p110, %p111
      %s114 = sadd.s32 %s113, 1
      %p117 = scmp.eq.s32.totalorder %s11, 1
      %p118 = scmp.ne.s32.totalorder %s113, %s115
      %p119 = scmp.eq.s32.totalorder %s11, 0
      %p120 = por %p118, %p119
      %p121 = scmp.ne.s32.totalorder %s113, %s115
      %p122 = scmp.eq.s32.totalorder %s16, 1
      %p123 = por %p121, %p122
      %p124 = scmp.ne.s32.totalorder %s115, %s116
      %p125 = scmp.eq.s32.totalorder %s16, 0
      %p126 = por %p124, %p125
      %p127 = scmp.ne.s32.totalorder %s115, %s116
      %p128 = scmp.eq.s32.totalorder %s17, 1
      %p129 = por %p127, %p128
      %p131 = scmp.ne.s32.totalorder %s116, %s130
      %p132 = scmp.eq.s32.totalorder %s17, 0
      %p133 = por %p131, %p132
      %s134 = ssub.s32 %s11, %s18
      %p135 = scmp.eq.s32.totalorder %s134, 0
      %s137 = sadd.s32 %s136, 1
      %s138 = scalar_select %p135, %s136, %s137
      %p141 = pneg %p135
      %p142 = scmp.eq.s32.totalorder %s11, 1
      %p143 = por %p141, %p142
      %p144 = scmp.ne.s32.totalorder %s136, %s139
      %p145 = scmp.eq.s32.totalorder %s11, 0
      %p146 = por %p144, %p145
      %p147 = scmp.ne.s32.totalorder %s136, %s139
      %p148 = scmp.eq.s32.totalorder %s16, 1
      %p149 = por %p147, %p148
      %p150 = scmp.ne.s32.totalorder %s139, %s140
      %p151 = scmp.eq.s32.totalorder %s16, 0
      %p152 = por %p150, %p151
      %p153 = scmp.ne.s32.totalorder %s139, %s140
      %p154 = scmp.eq.s32.totalorder %s17, 1
      %p155 = por %p153, %p154
      %p157 = scmp.ne.s32.totalorder %s140, %s156
      %p158 = scmp.eq.s32.totalorder %s17, 0
      %p159 = por %p157, %p158
      %p160 = scmp.le.s32.totalorder 1, %s11
      %p161 = scmp.lt.s32.totalorder %s11, 3
      %p162 = pnand %p160, %p161
      %p163 = pneg %p162
      // Predicated region
      $region9: #{paraphraser_forward.1} parent=5 // pred_check
        _
      $region10: #{paraphraser_forward.1} parent=5 // pred_check_branch
        %165 = sbr.rel (%p162) target = $region12
      $region11: #{paraphraser_forward.1} parent=5 // pred_region
        %s166 = ssub.s32 %s11, 1
        // Predicated region
        $region13: #{paraphraser_forward.1} parent=11 // pred_check
          %p167 = pneg %p84
        $region14: #{paraphraser_forward.1} parent=11 // pred_check_branch
          %169 = sbr.rel (%p167) target = $region16
        $region15: #{paraphraser_forward.1} parent=11 // pred_region
          _
        $region16: #{paraphraser_forward.1} parent=11 // pred_fallthru
          _
        // Predicated region
        $region17: #{paraphraser_forward.1} parent=11 // pred_check
          %p170 = pneg %p105
        $region18: #{paraphraser_forward.1} parent=11 // pred_check_branch
          %172 = sbr.rel (%p170) target = $region20
        $region19: #{paraphraser_forward.1} parent=11 // pred_region
          _
        $region20: #{paraphraser_forward.1} parent=11 // pred_fallthru
          _
        // Predicated region
        $region21: #{paraphraser_forward.1} parent=11 // pred_check
          %p173 = pneg %p126
        $region22: #{paraphraser_forward.1} parent=11 // pred_check_branch
          %175 = sbr.rel (%p173) target = $region24
        $region23: #{paraphraser_forward.1} parent=11 // pred_region
          _
        $region24: #{paraphraser_forward.1} parent=11 // pred_fallthru
          _
      $region12: #{paraphraser_forward.1} parent=5 // pred_fallthru
        _
      %p176 = scmp.lt.s32.totalorder %s11, 2
      // Predicated region
      $region25: #{paraphraser_forward.1} parent=5 // pred_check
        %p177 = pneg %p176
      $region26: #{paraphraser_forward.1} parent=5 // pred_check_branch
        %179 = sbr.rel (%p177) target = $region28
      $region27: #{paraphraser_forward.1} parent=5 // pred_region
        // Predicated region
        $region29: #{paraphraser_forward.1} parent=27 // pred_check
          %p180 = pneg %p31
        $region30: #{paraphraser_forward.1} parent=27 // pred_check_branch
          %182 = sbr.rel (%p180) target = $region32
        $region31: #{paraphraser_forward.1} parent=27 // pred_region
          %s183 = smul.u32 4, %s11
          %p184 = scmp.lt.s32.totalorder %s183, 7
          %s185 = scalar_select %p184, %s183, 7
          %s186 = smul.addr %s185, 8
          %s187 = scalar_lea.vmem %s0, %s186
          %s188 = smul.u32 4, %s11
        $region32: #{paraphraser_forward.1} parent=27 // pred_fallthru
          _
        // Predicated region
        $region33: #{paraphraser_forward.1} parent=27 // pred_check
          %p189 = pneg %p57
        $region34: #{paraphraser_forward.1} parent=27 // pred_check_branch
          %191 = sbr.rel (%p189) target = $region36
        $region35: #{paraphraser_forward.1} parent=27 // pred_region
          %s192 = sand.u32 %s47, 1
          %s193 = sand.u32 %s47, 1
          %s194 = smul.addr %s193, 48
          %s195 = scalar_lea.vmem [#allocation2], %s194
          %s196 = smul.u32 4, %s11
          %s197 = smul.addr %s196, 4
          %s198 = scalar_lea.vmem %s1, %s197
          // Predicated region
          $region37: #{paraphraser_forward.1} parent=35 // pred_check
            _
          $region38: #{paraphraser_forward.1} parent=35 // pred_check_branch
            %200 = sbr.rel (0) target = $region40
          $region39: #{paraphraser_forward.1} parent=35 // pred_region
            // Predicated region
            $region41: #{paraphraser_forward.1} parent=39 // pred_check
              _
            $region42: #{paraphraser_forward.1} parent=39 // pred_check_branch
              %202 = sbr.rel target = $region44
            $region43: #{paraphraser_forward.1} parent=39 // pred_region
              // Predicated region
              $region56: #{paraphraser_forward.1} parent=43 // pred_check
                _
              $region57: #{paraphraser_forward.1} parent=43 // pred_check_branch
                %239 = sbr.rel (0) target = $region59
              $region58: #{paraphraser_forward.1} parent=43 // pred_region
                loop: start=0, step=1, limit=1
                $region60: #{paraphraser_forward.1} parent=58 // loop_pre_header
                  _
                $region61: #{paraphraser_forward.1} parent=58 // loop_header
                  %s241 = sphi 0, %s245
                  %p242 = scmp.ge.s32.totalorder %s241, 1
                  %s246 = sphi %s198, %s198
                  %s247 = sphi %s195, %s195
                $region62: #{paraphraser_forward.1} parent=58 // loop_header_branch
                  %244 = sbr.rel (%p242) target = $region66
                $region63: #{paraphraser_forward.1} parent=58 // loop_body
                  _
                $region64: #{paraphraser_forward.1} parent=58 // loop_footer
                  %s245 = sadd.s32 1, %s241
                $region65: #{paraphraser_forward.1} parent=58 // loop_footer_branch
                  %240 = sbr.rel target = $region61
                $region66: #{paraphraser_forward.1} parent=58 // loop_exit
                  _
                loop: start=0, step=1, limit=1
                $region67: #{paraphraser_forward.1} parent=58 // loop_pre_header
                  _
                $region68: #{paraphraser_forward.1} parent=58 // loop_header
                  %s250 = sphi 0, %s254
                  %p251 = scmp.ge.s32.totalorder %s250, 1
                  %s255 = sphi %s198, %s198
                  %s256 = sphi %s195, %s195
                $region69: #{paraphraser_forward.1} parent=58 // loop_header_branch
                  %253 = sbr.rel (%p251) target = $region73
                $region70: #{paraphraser_forward.1} parent=58 // loop_body
                  %v257 = vld [vmem:[%s255] sm:$0xf]
                  %258 = vst [vmem:[%s256] sm:$0xf] %v257
                  %v259 = vld [vmem:[%s255 + $0x4] sm:$0xf]
                  %260 = vst [vmem:[%s256 + $0x4] sm:$0xf] %v259
                  %v261 = vld [vmem:[%s255 + $0x8] sm:$0xf]
                  %262 = vst [vmem:[%s256 + $0x8] sm:$0xf] %v261
                  %v263 = vld [vmem:[%s255 + $0xc] sm:$0xf]
                  %264 = vst [vmem:[%s256 + $0xc] sm:$0xf] %v263
                  %v265 = vld [vmem:[%s255 + $0x20] sm:$0xf]
                  %266 = vst [vmem:[%s256 + $0x10] sm:$0xf] %v265
                  %v267 = vld [vmem:[%s255 + $0x24] sm:$0xf]
                  %268 = vst [vmem:[%s256 + $0x14] sm:$0xf] %v267
                  %v269 = vld [vmem:[%s255 + $0x28] sm:$0xf]
                  %270 = vst [vmem:[%s256 + $0x18] sm:$0xf] %v269
                  %v271 = vld [vmem:[%s255 + $0x2c] sm:$0xf]
                  %272 = vst [vmem:[%s256 + $0x1c] sm:$0xf] %v271
                  %v273 = vld [vmem:[%s255 + $0x40] sm:$0xf]
                  %274 = vst [vmem:[%s256 + $0x20] sm:$0xf] %v273
                  %v275 = vld [vmem:[%s255 + $0x44] sm:$0xf]
                  %276 = vst [vmem:[%s256 + $0x24] sm:$0xf] %v275
                  %v277 = vld [vmem:[%s255 + $0x48] sm:$0xf]
                  %278 = vst [vmem:[%s256 + $0x28] sm:$0xf] %v277
                  %v279 = vld [vmem:[%s255 + $0x4c] sm:$0xf]
                  %280 = vst [vmem:[%s256 + $0x2c] sm:$0xf] %v279
                $region71: #{paraphraser_forward.1} parent=58 // loop_footer
                  %s254 = sadd.s32 1, %s250
                $region72: #{paraphraser_forward.1} parent=58 // loop_footer_branch
                  %249 = sbr.rel target = $region68
                $region73: #{paraphraser_forward.1} parent=58 // loop_exit
                  _
              $region59: #{paraphraser_forward.1} parent=43 // pred_fallthru
                _
            $region44: #{paraphraser_forward.1} parent=39 // pred_fallthru
              _
            // Predicated region
            $region45: #{paraphraser_forward.1} parent=39 // pred_check
              _
            $region46: #{paraphraser_forward.1} parent=39 // pred_check_branch
              %204 = sbr.rel (0) target = $region48
            $region47: #{paraphraser_forward.1} parent=39 // pred_region
              loop: start=0, step=1, limit=1
              $region49: #{paraphraser_forward.1} parent=47 // loop_pre_header
                _
              $region50: #{paraphraser_forward.1} parent=47 // loop_header
                %s207 = sphi 0, %s211
                %p208 = scmp.ge.s32.totalorder %s207, 1
                %s212 = sphi %s198, %s198
                %s213 = sphi %s195, %s195
              $region51: #{paraphraser_forward.1} parent=47 // loop_header_branch
                %210 = sbr.rel (%p208) target = $region55
              $region52: #{paraphraser_forward.1} parent=47 // loop_body
                %v214 = vld [vmem:[%s212] sm:$0xf]
                %215 = vst [vmem:[%s213] sm:$0xf] %v214
                %v216 = vld [vmem:[%s212 + $0x4] sm:$0xf]
                %217 = vst [vmem:[%s213 + $0x4] sm:$0xf] %v216
                %v218 = vld [vmem:[%s212 + $0x8] sm:$0xf]
                %219 = vst [vmem:[%s213 + $0x8] sm:$0xf] %v218
                %v220 = vld [vmem:[%s212 + $0xc] sm:$0xf]
                %221 = vst [vmem:[%s213 + $0xc] sm:$0xf] %v220
                %v222 = vld [vmem:[%s212 + $0x20] sm:$0xf]
                %223 = vst [vmem:[%s213 + $0x10] sm:$0xf] %v222
                %v224 = vld [vmem:[%s212 + $0x24] sm:$0xf]
                %225 = vst [vmem:[%s213 + $0x14] sm:$0xf] %v224
                %v226 = vld [vmem:[%s212 + $0x28] sm:$0xf]
                %227 = vst [vmem:[%s213 + $0x18] sm:$0xf] %v226
                %v228 = vld [vmem:[%s212 + $0x2c] sm:$0xf]
                %229 = vst [vmem:[%s213 + $0x1c] sm:$0xf] %v228
                %v230 = vld [vmem:[%s212 + $0x40] sm:$0xf]
                %231 = vst [vmem:[%s213 + $0x20] sm:$0xf] %v230
                %v232 = vld [vmem:[%s212 + $0x44] sm:$0xf]
                %233 = vst [vmem:[%s213 + $0x24] sm:$0xf] %v232
                %v234 = vld [vmem:[%s212 + $0x48] sm:$0xf]
                %235 = vst [vmem:[%s213 + $0x28] sm:$0xf] %v234
                %v236 = vld [vmem:[%s212 + $0x4c] sm:$0xf]
                %237 = vst [vmem:[%s213 + $0x2c] sm:$0xf] %v236
              $region53: #{paraphraser_forward.1} parent=47 // loop_footer
                %s211 = sadd.s32 1, %s207
              $region54: #{paraphraser_forward.1} parent=47 // loop_footer_branch
                %206 = sbr.rel target = $region50
              $region55: #{paraphraser_forward.1} parent=47 // loop_exit
                _
            $region48: #{paraphraser_forward.1} parent=39 // pred_fallthru
              _
          $region40: #{paraphraser_forward.1} parent=35 // pred_fallthru
            _
          %281 = vnop
        $region36: #{paraphraser_forward.1} parent=27 // pred_fallthru
          _
      $region28: #{paraphraser_forward.1} parent=5 // pred_fallthru
        _
      %p282 = scmp.le.s32.totalorder 1, %s11
      %p283 = scmp.lt.s32.totalorder %s11, 3
      %p284 = pnand %p282, %p283
      %p285 = pneg %p284
      // Predicated region
      $region74: #{paraphraser_forward.1} parent=5 // pred_check
        _
      $region75: #{paraphraser_forward.1} parent=5 // pred_check_branch
        %287 = sbr.rel (%p284) target = $region77
      $region76: #{paraphraser_forward.1} parent=5 // pred_region
        %s288 = ssub.s32 %s11, 1
        %s289 = sand.u32 %s50, 1
        %s290 = sand.u32 %s50, 1
        %s291 = smul.addr %s290, 48
        %s292 = scalar_lea.vmem [#allocation2], %s291
        // Predicated region
        $region78: #{paraphraser_forward.1} parent=76 // pred_check
          %p293 = pneg %p63
        $region79: #{paraphraser_forward.1} parent=76 // pred_check_branch
          %295 = sbr.rel (%p293) target = $region81
        $region80: #{paraphraser_forward.1} parent=76 // pred_region
          _
        $region81: #{paraphraser_forward.1} parent=76 // pred_fallthru
          _
        %s296 = smul.u32 4, %s16
        %p297 = scmp.lt.s32.totalorder %s296, 7
        %s298 = scalar_select %p297, %s296, 7
        %s299 = smul.addr %s298, 8
        %s300 = scalar_lea.vmem %s0, %s299
        %p301 = pneg %p37
        %p302 = pneg %p34
        %s303 = sand.u32 %s50, 1
        %s304 = sand.u32 %s50, 1
        %s305 = smul.addr %s304, 48
        %s306 = scalar_lea.vmem [#allocation2], %s305
        %p307 = pneg %p63
        %p308 = pneg %p60
        %p309 = pneg %p84
        %p310 = pneg %p81
        %p311 = pneg %p105
        %p312 = pneg %p102
        %p313 = pneg %p126
        %p314 = pneg %p123
        %p315 = pneg %p152
        %p316 = pneg %p149
        %s317 = smul.u32 4, %s16
        %p318 = scmp.lt.s32.totalorder %s317, 7
        %s319 = scalar_select %p318, %s317, 7
        %s320 = smul.addr %s319, 4
        %s321 = scalar_lea.vmem %s5, %s320
        %s322 = smul.u32 4, %s16
        %p323 = scmp.lt.s32.totalorder %s322, 7
        %s324 = scalar_select %p323, %s322, 7
        %s325 = smul.addr %s324, 8
        %s326 = scalar_lea.vmem %s0, %s325
        %s327 = smul.u32 4, %s16
        %s328 = smul.u32 4, %s16
        %s329 = smul.u32 4, %s16
        %p330 = scmp.lt.s32.totalorder %s329, 7
        %s331 = scalar_select %p330, %s329, 7
        %s332 = smul.addr %s331, 4
        %s333 = scalar_lea.vmem %s5, %s332
        %s334 = smul.u32 4, %s16
        %v336 = vld [vmem:[%s2] sm:$0xf]
        %v337 = vld [vmem:[%s2 + $0x4] sm:$0xf]
        %v338 = vld [vmem:[%s2 + $0x8] sm:$0xf]
        %v339 = vld [vmem:[%s2 + $0xc] sm:$0xf]
        %v340 = vld [vmem:[%s2 + $0x10] sm:$0xf]
        %v341 = vld [vmem:[%s2 + $0x14] sm:$0xf]
        %v342 = vld [vmem:[%s2 + $0x18] sm:$0xf]
        %v343 = vld [vmem:[%s2 + $0x1c] sm:$0xf]
        %v344 = vld [vmem:[%s2 + $0x20] sm:$0xf]
        %v345 = vld [vmem:[%s2 + $0x24] sm:$0xf]
        %v346 = vld [vmem:[%s2 + $0x28] sm:$0xf]
        %v347 = vld [vmem:[%s2 + $0x2c] sm:$0xf]
        %v348 = vld [vmem:[%s2 + $0x30] sm:$0xf]
        %v349 = vld [vmem:[%s2 + $0x34] sm:$0xf]
        %v350 = vld [vmem:[%s2 + $0x38] sm:$0xf]
        %v351 = vld [vmem:[%s2 + $0x3c] sm:$0xf]
        %v352 = vld [vmem:[%s3] sm:$0xff]
        %v353 = vld [vmem:[%s3 + $0x8] sm:$0xff]
        %v354 = vld [vmem:[%s3 + $0x10] sm:$0xff]
        %v355 = vld [vmem:[%s3 + $0x18] sm:$0xff]
        %v356 = vld [vmem:[%s3 + $0x20] sm:$0xff]
        %v357 = vld [vmem:[%s3 + $0x28] sm:$0xff]
        %v358 = vld [vmem:[%s3 + $0x30] sm:$0xff]
        %v359 = vld [vmem:[%s3 + $0x38] sm:$0xff]
        %v360 = vld [vmem:[%s3 + $0x40] sm:$0xff]
        %v361 = vld [vmem:[%s3 + $0x48] sm:$0xff]
        %v362 = vld [vmem:[%s3 + $0x50] sm:$0xff]
        %v363 = vld [vmem:[%s3 + $0x58] sm:$0xff]
        %v364 = vld [vmem:[%s3 + $0x60] sm:$0xff]
        %v365 = vld [vmem:[%s3 + $0x68] sm:$0xff]
        %v366 = vld [vmem:[%s3 + $0x70] sm:$0xff]
        %v367 = vld [vmem:[%s3 + $0x78] sm:$0xff]
        %s368 = scalar_lea.vmem %s3, 128
        %v369 = vld [vmem:[%s368] sm:$0xff]
        %v370 = vld [vmem:[%s368 + $0x8] sm:$0xff]
        %v371 = vld [vmem:[%s368 + $0x10] sm:$0xff]
        %v372 = vld [vmem:[%s368 + $0x18] sm:$0xff]
        %v373 = vld [vmem:[%s368 + $0x20] sm:$0xff]
        %v374 = vld [vmem:[%s368 + $0x28] sm:$0xff]
        %v375 = vld [vmem:[%s368 + $0x30] sm:$0xff]
        %v376 = vld [vmem:[%s368 + $0x38] sm:$0xff]
        %v377 = vld [vmem:[%s368 + $0x40] sm:$0xff]
        %v378 = vld [vmem:[%s368 + $0x48] sm:$0xff]
        %v379 = vld [vmem:[%s368 + $0x50] sm:$0xff]
        %v380 = vld [vmem:[%s368 + $0x58] sm:$0xff]
        %v381 = vld [vmem:[%s368 + $0x60] sm:$0xff]
        %v382 = vld [vmem:[%s368 + $0x68] sm:$0xff]
        %v383 = vld [vmem:[%s368 + $0x70] sm:$0xff]
        %v384 = vld [vmem:[%s368 + $0x78] sm:$0xff]
        %v385 = vld [vmem:[%s4] sm:$0x3]
        %s386 = scalar_lea.vmem %s4, 2
        %v387 = vld [vmem:[%s386] sm:$0x3]
        %v388 = vld [vmem:[%s292] sm:$0xf]
        %v389 = vld [vmem:[%s292 + $0x4] sm:$0xf]
        %v390 = vld [vmem:[%s292 + $0x8] sm:$0xf]
        %v391 = vld [vmem:[%s292 + $0xc] sm:$0xf]
        %v392 = vld [vmem:[%s292 + $0x10] sm:$0xf]
        %v393 = vld [vmem:[%s292 + $0x14] sm:$0xf]
        %v394 = vld [vmem:[%s292 + $0x18] sm:$0xf]
        %v395 = vld [vmem:[%s292 + $0x1c] sm:$0xf]
        %v396 = vld [vmem:[%s292 + $0x20] sm:$0xf]
        %v397 = vld [vmem:[%s292 + $0x24] sm:$0xf]
        %v398 = vld [vmem:[%s292 + $0x28] sm:$0xf]
        %v399 = vld [vmem:[%s292 + $0x2c] sm:$0xf]
        %v412 = vunpack.c.l.b16 %v388
        %v413 = vunpack.c.l.b16 %v389
        %v414 = vunpack.c.l.b16 %v390
        %v415 = vunpack.c.l.b16 %v391
        %v416 = vunpack.c.l.b16 %v392
        %v417 = vunpack.c.l.b16 %v393
        %v418 = vunpack.c.l.b16 %v394
        %v419 = vunpack.c.l.b16 %v395
        %v420 = vunpack.c.l.b16 %v396
        %v421 = vunpack.c.l.b16 %v397
        %v422 = vunpack.c.l.b16 %v398
        %v423 = vunpack.c.l.b16 %v399
        %v424 = vpack.c.b16 %v413, %v412
        %v425 = vpack.c.b16 %v415, %v414
        %v426 = vpack.c.b16 %v417, %v416
        %v427 = vpack.c.b16 %v419, %v418
        %v428 = vpack.c.b16 %v421, %v420
        %v429 = vpack.c.b16 %v423, %v422
        %v452 = vunpack.c.l.b16 %v336
        %v453 = vunpack.c.l.b16 %v337
        %v454 = vunpack.c.l.b16 %v338
        %v455 = vunpack.c.l.b16 %v339
        %v456 = vunpack.c.l.b16 %v340
        %v457 = vunpack.c.l.b16 %v341
        %v458 = vunpack.c.l.b16 %v342
        %v459 = vunpack.c.l.b16 %v343
        %v460 = vunpack.c.l.b16 %v344
        %v461 = vunpack.c.l.b16 %v345
        %v462 = vunpack.c.l.b16 %v346
        %v463 = vunpack.c.l.b16 %v347
        %v464 = vunpack.c.l.b16 %v348
        %v465 = vunpack.c.l.b16 %v349
        %v466 = vunpack.c.l.b16 %v350
        %v467 = vunpack.c.l.b16 %v351
        %v468 = vpack.c.b16 %v453, %v452
        %v469 = vpack.c.b16 %v455, %v454
        %v470 = vpack.c.b16 %v457, %v456
        %v471 = vpack.c.b16 %v459, %v458
        %v472 = vpack.c.b16 %v461, %v460
        %v473 = vpack.c.b16 %v463, %v462
        %v474 = vpack.c.b16 %v465, %v464
        %v475 = vpack.c.b16 %v467, %v466
        %484 = vmatprep.subr.bf16.mxu0 0
        %485 = vmatpush1.bf16.msra.mxu0 %v468
        %486 = vmatprep.subr.bf16.mxu0 0
        %487 = vmatpush1.bf16.msra.mxu0 %v469
        %488 = vmatprep.subr.bf16.mxu0 0
        %489 = vmatpush1.bf16.msra.mxu0 %v470
        %490 = vmatprep.subr.bf16.mxu0 0
        %491 = vmatpush1.bf16.msra.mxu0 %v471
        %492 = vmatprep.subr.bf16.mxu0 0
        %493 = vmatpush1.bf16.msra.mxu0 %v472
        %494 = vmatprep.subr.bf16.mxu0 0
        %495 = vmatpush1.bf16.msra.mxu0 %v473
        %496 = vmatprep.subr.bf16.mxu0 0
        %497 = vmatpush1.bf16.msra.mxu0 %v474
        %498 = vmatprep.subr.bf16.mxu0 0
        %499 = vmatpush1.bf16.msra.mxu0 %v475
        %500 = vmatprep.subr.bf16.mxu0 0
        %501 = vmatpush1.bf16.msra.mxu0 0
        %502 = vmatprep.subr.bf16.mxu0 0
        %503 = vmatpush1.bf16.msra.mxu0 0
        %504 = vmatprep.subr.bf16.mxu0 0
        %505 = vmatpush1.bf16.msra.mxu0 0
        %506 = vmatprep.subr.bf16.mxu0 0
        %507 = vmatpush1.bf16.msra.mxu0 0
        %508 = vmatprep.subr.bf16.mxu0 0
        %509 = vmatpush1.bf16.msra.mxu0 0
        %510 = vmatprep.subr.bf16.mxu0 0
        %511 = vmatpush1.bf16.msra.mxu0 0
        %512 = vmatprep.subr.bf16.mxu0 0
        %513 = vmatpush1.bf16.msra.mxu0 0
        %514 = vmatprep.subr.bf16.mxu0 0
        %515 = vmatpush1.bf16.msra.mxu0 0
        %516 = vmatprep.mubr.bf16.mxu0 0
        %517 = vmatmul.mubr.bf16.gmra.mrb[0].mxu0 %v424
        %v518 = vpop.f32.mrb[0].mxu0
        %v519 = vadd.f32 0.0, %v518
        %v520 = vpop.f32.mrb[0].mxu0
        %v521 = vpop.f32.mrb[0].mxu0
        %v522 = vadd.f32 0.0, %v521
        %v523 = vpop.f32.mrb[0].mxu0
        %524 = vmatprep.mubr.bf16.mxu0 0
        %525 = vmatmul.mubr.bf16.gmra.mrb[0].mxu0 %v425
        %v526 = vpop.f32.mrb[0].mxu0
        %v527 = vadd.f32 0.0, %v526
        %v528 = vpop.f32.mrb[0].mxu0
        %v529 = vpop.f32.mrb[0].mxu0
        %v530 = vadd.f32 0.0, %v529
        %v531 = vpop.f32.mrb[0].mxu0
        %532 = vmatprep.mubr.bf16.mxu0 0
        %533 = vmatmul.mubr.bf16.gmra.mrb[0].mxu0 %v426
        %v534 = vpop.f32.mrb[0].mxu0
        %v535 = vadd.f32 0.0, %v534
        %v536 = vpop.f32.mrb[0].mxu0
        %v537 = vpop.f32.mrb[0].mxu0
        %v538 = vadd.f32 0.0, %v537
        %v539 = vpop.f32.mrb[0].mxu0
        %540 = vmatprep.mubr.bf16.mxu0 0
        %541 = vmatmul.mubr.bf16.gmra.mrb[0].mxu0 %v427
        %v542 = vpop.f32.mrb[0].mxu0
        %v543 = vadd.f32 0.0, %v542
        %v544 = vpop.f32.mrb[0].mxu0
        %v545 = vpop.f32.mrb[0].mxu0
        %v546 = vadd.f32 0.0, %v545
        %v547 = vpop.f32.mrb[0].mxu0
        %548 = vmatprep.mubr.bf16.mxu0 0
        %549 = vmatmul.mubr.bf16.gmra.mrb[0].mxu0 %v428
        %v550 = vpop.f32.mrb[0].mxu0
        %v551 = vadd.f32 0.0, %v550
        %v552 = vpop.f32.mrb[0].mxu0
        %v553 = vpop.f32.mrb[0].mxu0
        %v554 = vadd.f32 0.0, %v553
        %v555 = vpop.f32.mrb[0].mxu0
        %556 = vmatprep.mubr.bf16.mxu0 0
        %557 = vmatmul.mubr.bf16.gmra.mrb[0].mxu0 %v429
        %v558 = vpop.f32.mrb[0].mxu0
        %v559 = vadd.f32 0.0, %v558
        %v560 = vpop.f32.mrb[0].mxu0
        %v561 = vpop.f32.mrb[0].mxu0
        %v562 = vadd.f32 0.0, %v561
        %v563 = vpop.f32.mrb[0].mxu0
        %564 = vdwg.mxu0
        %v565 = vpack.c.bf16 %v522, %v519
        %v566 = vpack.c.bf16 %v530, %v527
        %v567 = vpack.c.bf16 %v538, %v535
        %v568 = vpack.c.bf16 %v546, %v543
        %v569 = vpack.c.bf16 %v554, %v551
        %v570 = vpack.c.bf16 %v562, %v559
        %v572 = vlaneseq
        %v573 = vshrl.u32 %v572, 7
        %v574 = vsub.s32 0, %v573
        %v575 = vrot.slane %v385, %v574
        %v576 = vlaneseq
        %v577 = vshrl.u32 %v576, 7
        %v578 = vsub.s32 1, %v577
        %v579 = vrot.slane %v385, %v578
        %v598 = vunpack.c.l.b16 %v352
        %v599 = vunpack.c.h.b16 %v352
        %v600 = vunpack.c.l.b16 %v353
        %v601 = vunpack.c.h.b16 %v353
        %v602 = vunpack.c.l.b16 %v354
        %v603 = vunpack.c.h.b16 %v354
        %v604 = vunpack.c.l.b16 %v355
        %v605 = vunpack.c.h.b16 %v355
        %v606 = vunpack.c.l.b16 %v356
        %v607 = vunpack.c.h.b16 %v356
        %v608 = vunpack.c.l.b16 %v357
        %v609 = vunpack.c.h.b16 %v357
        %v610 = vunpack.c.l.b16 %v358
        %v611 = vunpack.c.h.b16 %v358
        %v612 = vunpack.c.l.b16 %v359
        %v613 = vunpack.c.h.b16 %v359
        %v614 = vunpack.c.l.b16 %v360
        %v615 = vunpack.c.h.b16 %v360
        %v616 = vunpack.c.l.b16 %v361
        %v617 = vunpack.c.h.b16 %v361
        %v618 = vunpack.c.l.b16 %v362
        %v619 = vunpack.c.h.b16 %v362
        %v620 = vunpack.c.l.b16 %v363
        %v621 = vunpack.c.h.b16 %v363
        %v622 = vunpack.c.l.b16 %v364
        %v623 = vunpack.c.h.b16 %v364
        %v624 = vunpack.c.l.b16 %v365
        %v625 = vunpack.c.h.b16 %v365
        %v626 = vunpack.c.l.b16 %v366
        %v627 = vunpack.c.h.b16 %v366
        %v628 = vunpack.c.l.b16 %v367
        %v629 = vunpack.c.h.b16 %v367
        %v630 = vpack.c.b16 %v600, %v598
        %v631 = vpack.c.b16 %v601, %v599
        %v632 = vpack.c.b16 %v604, %v602
        %v633 = vpack.c.b16 %v605, %v603
        %v634 = vpack.c.b16 %v608, %v606
        %v635 = vpack.c.b16 %v609, %v607
        %v636 = vpack.c.b16 %v612, %v610
        %v637 = vpack.c.b16 %v613, %v611
        %v638 = vpack.c.b16 %v616, %v614
        %v639 = vpack.c.b16 %v617, %v615
        %v640 = vpack.c.b16 %v620, %v618
        %v641 = vpack.c.b16 %v621, %v619
        %v642 = vpack.c.b16 %v624, %v622
        %v643 = vpack.c.b16 %v625, %v623
        %v644 = vpack.c.b16 %v628, %v626
        %v645 = vpack.c.b16 %v629, %v627
        %662 = vmatprep.subr.bf16.mxu0 %v631
        %663 = vmatpush1.bf16.msra.mxu0 %v630
        %664 = vmatprep.subr.bf16.mxu0 %v633
        %665 = vmatpush1.bf16.msra.mxu0 %v632
        %666 = vmatprep.subr.bf16.mxu0 %v635
        %667 = vmatpush1.bf16.msra.mxu0 %v634
        %668 = vmatprep.subr.bf16.mxu0 %v637
        %669 = vmatpush1.bf16.msra.mxu0 %v636
        %670 = vmatprep.subr.bf16.mxu0 %v639
        %671 = vmatpush1.bf16.msra.mxu0 %v638
        %672 = vmatprep.subr.bf16.mxu0 %v641
        %673 = vmatpush1.bf16.msra.mxu0 %v640
        %674 = vmatprep.subr.bf16.mxu0 %v643
        %675 = vmatpush1.bf16.msra.mxu0 %v642
        %676 = vmatprep.subr.bf16.mxu0 %v645
        %677 = vmatpush1.bf16.msra.mxu0 %v644
        %678 = vmatprep.subr.bf16.mxu0 0
        %679 = vmatpush1.bf16.msra.mxu0 0
        %680 = vmatprep.subr.bf16.mxu0 0
        %681 = vmatpush1.bf16.msra.mxu0 0
        %682 = vmatprep.subr.bf16.mxu0 0
        %683 = vmatpush1.bf16.msra.mxu0 0
        %684 = vmatprep.subr.bf16.mxu0 0
        %685 = vmatpush1.bf16.msra.mxu0 0
        %686 = vmatprep.subr.bf16.mxu0 0
        %687 = vmatpush1.bf16.msra.mxu0 0
        %688 = vmatprep.subr.bf16.mxu0 0
        %689 = vmatpush1.bf16.msra.mxu0 0
        %690 = vmatprep.subr.bf16.mxu0 0
        %691 = vmatpush1.bf16.msra.mxu0 0
        %692 = vmatprep.subr.bf16.mxu0 0
        %693 = vmatpush1.bf16.msra.mxu0 0
        %694 = vmatprep.mubr.bf16.mxu0 0
        %695 = vmatmul.mubr.bf16.gmra.mrb[0].mxu0 %v565
        %v696 = vpop.f32.mrb[0].mxu0
        %v697 = vadd.f32 %v575, %v696
        %v698 = vpop.f32.mrb[0].mxu0
        %v699 = vadd.f32 %v579, %v698
        %v700 = vpop.f32.mrb[0].mxu0
        %v701 = vadd.f32 %v575, %v700
        %v702 = vpop.f32.mrb[0].mxu0
        %v703 = vadd.f32 %v579, %v702
        %704 = vmatprep.mubr.bf16.mxu0 0
        %705 = vmatmul.mubr.bf16.gmra.mrb[0].mxu0 %v566
        %v706 = vpop.f32.mrb[0].mxu0
        %v707 = vadd.f32 %v575, %v706
        %v708 = vpop.f32.mrb[0].mxu0
        %v709 = vadd.f32 %v579, %v708
        %v710 = vpop.f32.mrb[0].mxu0
        %v711 = vadd.f32 %v575, %v710
        %v712 = vpop.f32.mrb[0].mxu0
        %v713 = vadd.f32 %v579, %v712
        %714 = vmatprep.mubr.bf16.mxu0 0
        %715 = vmatmul.mubr.bf16.gmra.mrb[0].mxu0 %v567
        %v716 = vpop.f32.mrb[0].mxu0
        %v717 = vadd.f32 %v575, %v716
        %v718 = vpop.f32.mrb[0].mxu0
        %v719 = vadd.f32 %v579, %v718
        %v720 = vpop.f32.mrb[0].mxu0
        %v721 = vadd.f32 %v575, %v720
        %v722 = vpop.f32.mrb[0].mxu0
        %v723 = vadd.f32 %v579, %v722
        %724 = vmatprep.mubr.bf16.mxu0 0
        %725 = vmatmul.mubr.bf16.gmra.mrb[0].mxu0 %v568
        %v726 = vpop.f32.mrb[0].mxu0
        %v727 = vadd.f32 %v575, %v726
        %v728 = vpop.f32.mrb[0].mxu0
        %v729 = vadd.f32 %v579, %v728
        %v730 = vpop.f32.mrb[0].mxu0
        %v731 = vadd.f32 %v575, %v730
        %v732 = vpop.f32.mrb[0].mxu0
        %v733 = vadd.f32 %v579, %v732
        %734 = vmatprep.mubr.bf16.mxu0 0
        %735 = vmatmul.mubr.bf16.gmra.mrb[0].mxu0 %v569
        %v736 = vpop.f32.mrb[0].mxu0
        %v737 = vadd.f32 %v575, %v736
        %v738 = vpop.f32.mrb[0].mxu0
        %v739 = vadd.f32 %v579, %v738
        %v740 = vpop.f32.mrb[0].mxu0
        %v741 = vadd.f32 %v575, %v740
        %v742 = vpop.f32.mrb[0].mxu0
        %v743 = vadd.f32 %v579, %v742
        %744 = vmatprep.mubr.bf16.mxu0 0
        %745 = vmatmul.mubr.bf16.gmra.mrb[0].mxu0 %v570
        %v746 = vpop.f32.mrb[0].mxu0
        %v747 = vadd.f32 %v575, %v746
        %v748 = vpop.f32.mrb[0].mxu0
        %v749 = vadd.f32 %v579, %v748
        %v750 = vpop.f32.mrb[0].mxu0
        %v751 = vadd.f32 %v575, %v750
        %v752 = vpop.f32.mrb[0].mxu0
        %v753 = vadd.f32 %v579, %v752
        %754 = vdwg.mxu0
        %v755 = vxor.u32 %v697, 2147483648
        %v756 = vxor.u32 %v701, 2147483648
        %v757 = vxor.u32 %v707, 2147483648
        %v758 = vxor.u32 %v711, 2147483648
        %v759 = vxor.u32 %v717, 2147483648
        %v760 = vxor.u32 %v721, 2147483648
        %v761 = vxor.u32 %v727, 2147483648
        %v762 = vxor.u32 %v731, 2147483648
        %v763 = vxor.u32 %v737, 2147483648
        %v764 = vxor.u32 %v741, 2147483648
        %v765 = vxor.u32 %v747, 2147483648
        %v766 = vxor.u32 %v751, 2147483648
        %v767 = vmul.f32 %v755, 1.442695
        %v768 = vpow.pop %v767
        %v769 = vmul.f32 %v756, 1.442695
        %v770 = vpow.pop %v769
        %v771 = vmul.f32 %v757, 1.442695
        %v772 = vpow.pop %v771
        %v773 = vmul.f32 %v758, 1.442695
        %v774 = vpow.pop %v773
        %v775 = vmul.f32 %v759, 1.442695
        %v776 = vpow.pop %v775
        %v777 = vmul.f32 %v760, 1.442695
        %v778 = vpow.pop %v777
        %v779 = vmul.f32 %v761, 1.442695
        %v780 = vpow.pop %v779
        %v781 = vmul.f32 %v762, 1.442695
        %v782 = vpow.pop %v781
        %v783 = vmul.f32 %v763, 1.442695
        %v784 = vpow.pop %v783
        %v785 = vmul.f32 %v764, 1.442695
        %v786 = vpow.pop %v785
        %v787 = vmul.f32 %v765, 1.442695
        %v788 = vpow.pop %v787
        %v789 = vmul.f32 %v766, 1.442695
        %v790 = vpow.pop %v789
        %v791 = vadd.f32 %v768, 1.0
        %v792 = vadd.f32 %v770, 1.0
        %v793 = vadd.f32 %v772, 1.0
        %v794 = vadd.f32 %v774, 1.0
        %v795 = vadd.f32 %v776, 1.0
        %v796 = vadd.f32 %v778, 1.0
        %v797 = vadd.f32 %v780, 1.0
        %v798 = vadd.f32 %v782, 1.0
        %v799 = vadd.f32 %v784, 1.0
        %v800 = vadd.f32 %v786, 1.0
        %v801 = vadd.f32 %v788, 1.0
        %v802 = vadd.f32 %v790, 1.0
        %v803 = vrcp.pop %v791
        %v804 = vmul.f32 1.0, %v803
        %v805 = vrcp.pop %v792
        %v806 = vmul.f32 1.0, %v805
        %v807 = vrcp.pop %v793
        %v808 = vmul.f32 1.0, %v807
        %v809 = vrcp.pop %v794
        %v810 = vmul.f32 1.0, %v809
        %v811 = vrcp.pop %v795
        %v812 = vmul.f32 1.0, %v811
        %v813 = vrcp.pop %v796
        %v814 = vmul.f32 1.0, %v813
        %v815 = vrcp.pop %v797
        %v816 = vmul.f32 1.0, %v815
        %v817 = vrcp.pop %v798
        %v818 = vmul.f32 1.0, %v817
        %v819 = vrcp.pop %v799
        %v820 = vmul.f32 1.0, %v819
        %v821 = vrcp.pop %v800
        %v822 = vmul.f32 1.0, %v821
        %v823 = vrcp.pop %v801
        %v824 = vmul.f32 1.0, %v823
        %v825 = vrcp.pop %v802
        %v826 = vmul.f32 1.0, %v825
        %v827 = vmax.f32 %v699, 0.0
        %v828 = vmax.f32 %v703, 0.0
        %v829 = vmax.f32 %v709, 0.0
        %v830 = vmax.f32 %v713, 0.0
        %v831 = vmax.f32 %v719, 0.0
        %v832 = vmax.f32 %v723, 0.0
        %v833 = vmax.f32 %v729, 0.0
        %v834 = vmax.f32 %v733, 0.0
        %v835 = vmax.f32 %v739, 0.0
        %v836 = vmax.f32 %v743, 0.0
        %v837 = vmax.f32 %v749, 0.0
        %v838 = vmax.f32 %v753, 0.0
        %v839 = vsub.f32 %v827, %v519
        %v840 = vsub.f32 %v828, %v522
        %v841 = vsub.f32 %v829, %v527
        %v842 = vsub.f32 %v830, %v530
        %v843 = vsub.f32 %v831, %v535
        %v844 = vsub.f32 %v832, %v538
        %v845 = vsub.f32 %v833, %v543
        %v846 = vsub.f32 %v834, %v546
        %v847 = vsub.f32 %v835, %v551
        %v848 = vsub.f32 %v836, %v554
        %v849 = vsub.f32 %v837, %v559
        %v850 = vsub.f32 %v838, %v562
        %v851 = vmul.f32 %v804, %v839
        %v852 = vmul.f32 %v806, %v840
        %v853 = vmul.f32 %v808, %v841
        %v854 = vmul.f32 %v810, %v842
        %v855 = vmul.f32 %v812, %v843
        %v856 = vmul.f32 %v814, %v844
        %v857 = vmul.f32 %v816, %v845
        %v858 = vmul.f32 %v818, %v846
        %v859 = vmul.f32 %v820, %v847
        %v860 = vmul.f32 %v822, %v848
        %v861 = vmul.f32 %v824, %v849
        %v862 = vmul.f32 %v826, %v850
        %v863 = vadd.f32 %v519, %v851
        %v864 = vadd.f32 %v522, %v852
        %v865 = vadd.f32 %v527, %v853
        %v866 = vadd.f32 %v530, %v854
        %v867 = vadd.f32 %v535, %v855
        %v868 = vadd.f32 %v538, %v856
        %v869 = vadd.f32 %v543, %v857
        %v870 = vadd.f32 %v546, %v858
        %v871 = vadd.f32 %v551, %v859
        %v872 = vadd.f32 %v554, %v860
        %v873 = vadd.f32 %v559, %v861
        %v874 = vadd.f32 %v562, %v862
        %v875 = vpack.c.bf16 %v864, %v863
        %v876 = vpack.c.bf16 %v866, %v865
        %v877 = vpack.c.bf16 %v868, %v867
        %v878 = vpack.c.bf16 %v870, %v869
        %v879 = vpack.c.bf16 %v872, %v871
        %v880 = vpack.c.bf16 %v874, %v873
        %v882 = vlaneseq
        %v883 = vshrl.u32 %v882, 7
        %v884 = vsub.s32 0, %v883
        %v885 = vrot.slane %v387, %v884
        %v886 = vlaneseq
        %v887 = vshrl.u32 %v886, 7
        %v888 = vsub.s32 1, %v887
        %v889 = vrot.slane %v387, %v888
        %v908 = vunpack.c.l.b16 %v369
        %v909 = vunpack.c.h.b16 %v369
        %v910 = vunpack.c.l.b16 %v370
        %v911 = vunpack.c.h.b16 %v370
        %v912 = vunpack.c.l.b16 %v371
        %v913 = vunpack.c.h.b16 %v371
        %v914 = vunpack.c.l.b16 %v372
        %v915 = vunpack.c.h.b16 %v372
        %v916 = vunpack.c.l.b16 %v373
        %v917 = vunpack.c.h.b16 %v373
        %v918 = vunpack.c.l.b16 %v374
        %v919 = vunpack.c.h.b16 %v374
        %v920 = vunpack.c.l.b16 %v375
        %v921 = vunpack.c.h.b16 %v375
        %v922 = vunpack.c.l.b16 %v376
        %v923 = vunpack.c.h.b16 %v376
        %v924 = vunpack.c.l.b16 %v377
        %v925 = vunpack.c.h.b16 %v377
        %v926 = vunpack.c.l.b16 %v378
        %v927 = vunpack.c.h.b16 %v378
        %v928 = vunpack.c.l.b16 %v379
        %v929 = vunpack.c.h.b16 %v379
        %v930 = vunpack.c.l.b16 %v380
        %v931 = vunpack.c.h.b16 %v380
        %v932 = vunpack.c.l.b16 %v381
        %v933 = vunpack.c.h.b16 %v381
        %v934 = vunpack.c.l.b16 %v382
        %v935 = vunpack.c.h.b16 %v382
        %v936 = vunpack.c.l.b16 %v383
        %v937 = vunpack.c.h.b16 %v383
        %v938 = vunpack.c.l.b16 %v384
        %v939 = vunpack.c.h.b16 %v384
        %v940 = vpack.c.b16 %v910, %v908
        %v941 = vpack.c.b16 %v911, %v909
        %v942 = vpack.c.b16 %v914, %v912
        %v943 = vpack.c.b16 %v915, %v913
        %v944 = vpack.c.b16 %v918, %v916
        %v945 = vpack.c.b16 %v919, %v917
        %v946 = vpack.c.b16 %v922, %v920
        %v947 = vpack.c.b16 %v923, %v921
        %v948 = vpack.c.b16 %v926, %v924
        %v949 = vpack.c.b16 %v927, %v925
        %v950 = vpack.c.b16 %v930, %v928
        %v951 = vpack.c.b16 %v931, %v929
        %v952 = vpack.c.b16 %v934, %v932
        %v953 = vpack.c.b16 %v935, %v933
        %v954 = vpack.c.b16 %v938, %v936
        %v955 = vpack.c.b16 %v939, %v937
        %972 = vmatprep.subr.bf16.mxu0 %v941
        %973 = vmatpush1.bf16.msra.mxu0 %v940
        %974 = vmatprep.subr.bf16.mxu0 %v943
        %975 = vmatpush1.bf16.msra.mxu0 %v942
        %976 = vmatprep.subr.bf16.mxu0 %v945
        %977 = vmatpush1.bf16.msra.mxu0 %v944
        %978 = vmatprep.subr.bf16.mxu0 %v947
        %979 = vmatpush1.bf16.msra.mxu0 %v946
        %980 = vmatprep.subr.bf16.mxu0 %v949
        %981 = vmatpush1.bf16.msra.mxu0 %v948
        %982 = vmatprep.subr.bf16.mxu0 %v951
        %983 = vmatpush1.bf16.msra.mxu0 %v950
        %984 = vmatprep.subr.bf16.mxu0 %v953
        %985 = vmatpush1.bf16.msra.mxu0 %v952
        %986 = vmatprep.subr.bf16.mxu0 %v955
        %987 = vmatpush1.bf16.msra.mxu0 %v954
        %988 = vmatprep.subr.bf16.mxu0 0
        %989 = vmatpush1.bf16.msra.mxu0 0
        %990 = vmatprep.subr.bf16.mxu0 0
        %991 = vmatpush1.bf16.msra.mxu0 0
        %992 = vmatprep.subr.bf16.mxu0 0
        %993 = vmatpush1.bf16.msra.mxu0 0
        %994 = vmatprep.subr.bf16.mxu0 0
        %995 = vmatpush1.bf16.msra.mxu0 0
        %996 = vmatprep.subr.bf16.mxu0 0
        %997 = vmatpush1.bf16.msra.mxu0 0
        %998 = vmatprep.subr.bf16.mxu0 0
        %999 = vmatpush1.bf16.msra.mxu0 0
        %1000 = vmatprep.subr.bf16.mxu0 0
        %1001 = vmatpush1.bf16.msra.mxu0 0
        %1002 = vmatprep.subr.bf16.mxu0 0
        %1003 = vmatpush1.bf16.msra.mxu0 0
        %1004 = vmatprep.mubr.bf16.mxu0 0
        %1005 = vmatmul.mubr.bf16.gmra.mrb[0].mxu0 %v875
        %v1006 = vpop.f32.mrb[0].mxu0
        %v1007 = vadd.f32 %v885, %v1006
        %v1008 = vpop.f32.mrb[0].mxu0
        %v1009 = vadd.f32 %v889, %v1008
        %v1010 = vpop.f32.mrb[0].mxu0
        %v1011 = vadd.f32 %v885, %v1010
        %v1012 = vpop.f32.mrb[0].mxu0
        %v1013 = vadd.f32 %v889, %v1012
        %1014 = vmatprep.mubr.bf16.mxu0 0
        %1015 = vmatmul.mubr.bf16.gmra.mrb[0].mxu0 %v876
        %v1016 = vpop.f32.mrb[0].mxu0
        %v1017 = vadd.f32 %v885, %v1016
        %v1018 = vpop.f32.mrb[0].mxu0
        %v1019 = vadd.f32 %v889, %v1018
        %v1020 = vpop.f32.mrb[0].mxu0
        %v1021 = vadd.f32 %v885, %v1020
        %v1022 = vpop.f32.mrb[0].mxu0
        %v1023 = vadd.f32 %v889, %v1022
        %1024 = vmatprep.mubr.bf16.mxu0 0
        %1025 = vmatmul.mubr.bf16.gmra.mrb[0].mxu0 %v877
        %v1026 = vpop.f32.mrb[0].mxu0
        %v1027 = vadd.f32 %v885, %v1026
        %v1028 = vpop.f32.mrb[0].mxu0
        %v1029 = vadd.f32 %v889, %v1028
        %v1030 = vpop.f32.mrb[0].mxu0
        %v1031 = vadd.f32 %v885, %v1030
        %v1032 = vpop.f32.mrb[0].mxu0
        %v1033 = vadd.f32 %v889, %v1032
        %1034 = vmatprep.mubr.bf16.mxu0 0
        %1035 = vmatmul.mubr.bf16.gmra.mrb[0].mxu0 %v878
        %v1036 = vpop.f32.mrb[0].mxu0
        %v1037 = vadd.f32 %v885, %v1036
        %v1038 = vpop.f32.mrb[0].mxu0
        %v1039 = vadd.f32 %v889, %v1038
        %v1040 = vpop.f32.mrb[0].mxu0
        %v1041 = vadd.f32 %v885, %v1040
        %v1042 = vpop.f32.mrb[0].mxu0
        %v1043 = vadd.f32 %v889, %v1042
        %1044 = vmatprep.mubr.bf16.mxu0 0
        %1045 = vmatmul.mubr.bf16.gmra.mrb[0].mxu0 %v879
        %v1046 = vpop.f32.mrb[0].mxu0
        %v1047 = vadd.f32 %v885, %v1046
        %v1048 = vpop.f32.mrb[0].mxu0
        %v1049 = vadd.f32 %v889, %v1048
        %v1050 = vpop.f32.mrb[0].mxu0
        %v1051 = vadd.f32 %v885, %v1050
        %v1052 = vpop.f32.mrb[0].mxu0
        %v1053 = vadd.f32 %v889, %v1052
        %1054 = vmatprep.mubr.bf16.mxu0 0
        %1055 = vmatmul.mubr.bf16.gmra.mrb[0].mxu0 %v880
        %v1056 = vpop.f32.mrb[0].mxu0
        %v1057 = vadd.f32 %v885, %v1056
        %v1058 = vpop.f32.mrb[0].mxu0
        %v1059 = vadd.f32 %v889, %v1058
        %v1060 = vpop.f32.mrb[0].mxu0
        %v1061 = vadd.f32 %v885, %v1060
        %v1062 = vpop.f32.mrb[0].mxu0
        %v1063 = vadd.f32 %v889, %v1062
        %1064 = vdwg.mxu0
        %v1065 = vxor.u32 %v1007, 2147483648
        %v1066 = vxor.u32 %v1011, 2147483648
        %v1067 = vxor.u32 %v1017, 2147483648
        %v1068 = vxor.u32 %v1021, 2147483648
        %v1069 = vxor.u32 %v1027, 2147483648
        %v1070 = vxor.u32 %v1031, 2147483648
        %v1071 = vxor.u32 %v1037, 2147483648
        %v1072 = vxor.u32 %v1041, 2147483648
        %v1073 = vxor.u32 %v1047, 2147483648
        %v1074 = vxor.u32 %v1051, 2147483648
        %v1075 = vxor.u32 %v1057, 2147483648
        %v1076 = vxor.u32 %v1061, 2147483648
        %v1077 = vmul.f32 %v1065, 1.442695
        %v1078 = vpow.pop %v1077
        %v1079 = vmul.f32 %v1066, 1.442695
        %v1080 = vpow.pop %v1079
        %v1081 = vmul.f32 %v1067, 1.442695
        %v1082 = vpow.pop %v1081
        %v1083 = vmul.f32 %v1068, 1.442695
        %v1084 = vpow.pop %v1083
        %v1085 = vmul.f32 %v1069, 1.442695
        %v1086 = vpow.pop %v1085
        %v1087 = vmul.f32 %v1070, 1.442695
        %v1088 = vpow.pop %v1087
        %v1089 = vmul.f32 %v1071, 1.442695
        %v1090 = vpow.pop %v1089
        %v1091 = vmul.f32 %v1072, 1.442695
        %v1092 = vpow.pop %v1091
        %v1093 = vmul.f32 %v1073, 1.442695
        %v1094 = vpow.pop %v1093
        %v1095 = vmul.f32 %v1074, 1.442695
        %v1096 = vpow.pop %v1095
        %v1097 = vmul.f32 %v1075, 1.442695
        %v1098 = vpow.pop %v1097
        %v1099 = vmul.f32 %v1076, 1.442695
        %v1100 = vpow.pop %v1099
        %v1101 = vadd.f32 %v1078, 1.0
        %v1102 = vadd.f32 %v1080, 1.0
        %v1103 = vadd.f32 %v1082, 1.0
        %v1104 = vadd.f32 %v1084, 1.0
        %v1105 = vadd.f32 %v1086, 1.0
        %v1106 = vadd.f32 %v1088, 1.0
        %v1107 = vadd.f32 %v1090, 1.0
        %v1108 = vadd.f32 %v1092, 1.0
        %v1109 = vadd.f32 %v1094, 1.0
        %v1110 = vadd.f32 %v1096, 1.0
        %v1111 = vadd.f32 %v1098, 1.0
        %v1112 = vadd.f32 %v1100, 1.0
        %v1113 = vrcp.pop %v1101
        %v1114 = vmul.f32 1.0, %v1113
        %v1115 = vrcp.pop %v1102
        %v1116 = vmul.f32 1.0, %v1115
        %v1117 = vrcp.pop %v1103
        %v1118 = vmul.f32 1.0, %v1117
        %v1119 = vrcp.pop %v1104
        %v1120 = vmul.f32 1.0, %v1119
        %v1121 = vrcp.pop %v1105
        %v1122 = vmul.f32 1.0, %v1121
        %v1123 = vrcp.pop %v1106
        %v1124 = vmul.f32 1.0, %v1123
        %v1125 = vrcp.pop %v1107
        %v1126 = vmul.f32 1.0, %v1125
        %v1127 = vrcp.pop %v1108
        %v1128 = vmul.f32 1.0, %v1127
        %v1129 = vrcp.pop %v1109
        %v1130 = vmul.f32 1.0, %v1129
        %v1131 = vrcp.pop %v1110
        %v1132 = vmul.f32 1.0, %v1131
        %v1133 = vrcp.pop %v1111
        %v1134 = vmul.f32 1.0, %v1133
        %v1135 = vrcp.pop %v1112
        %v1136 = vmul.f32 1.0, %v1135
        %v1137 = vmax.f32 %v1009, 0.0
        %v1138 = vmax.f32 %v1013, 0.0
        %v1139 = vmax.f32 %v1019, 0.0
        %v1140 = vmax.f32 %v1023, 0.0
        %v1141 = vmax.f32 %v1029, 0.0
        %v1142 = vmax.f32 %v1033, 0.0
        %v1143 = vmax.f32 %v1039, 0.0
        %v1144 = vmax.f32 %v1043, 0.0
        %v1145 = vmax.f32 %v1049, 0.0
        %v1146 = vmax.f32 %v1053, 0.0
        %v1147 = vmax.f32 %v1059, 0.0
        %v1148 = vmax.f32 %v1063, 0.0
        %v1149 = vsub.f32 %v1137, %v863
        %v1150 = vsub.f32 %v1138, %v864
        %v1151 = vsub.f32 %v1139, %v865
        %v1152 = vsub.f32 %v1140, %v866
        %v1153 = vsub.f32 %v1141, %v867
        %v1154 = vsub.f32 %v1142, %v868
        %v1155 = vsub.f32 %v1143, %v869
        %v1156 = vsub.f32 %v1144, %v870
        %v1157 = vsub.f32 %v1145, %v871
        %v1158 = vsub.f32 %v1146, %v872
        %v1159 = vsub.f32 %v1147, %v873
        %v1160 = vsub.f32 %v1148, %v874
        %v1161 = vmul.f32 %v1114, %v1149
        %v1162 = vmul.f32 %v1116, %v1150
        %v1163 = vmul.f32 %v1118, %v1151
        %v1164 = vmul.f32 %v1120, %v1152
        %v1165 = vmul.f32 %v1122, %v1153
        %v1166 = vmul.f32 %v1124, %v1154
        %v1167 = vmul.f32 %v1126, %v1155
        %v1168 = vmul.f32 %v1128, %v1156
        %v1169 = vmul.f32 %v1130, %v1157
        %v1170 = vmul.f32 %v1132, %v1158
        %v1171 = vmul.f32 %v1134, %v1159
        %v1172 = vmul.f32 %v1136, %v1160
        %v1173 = vadd.f32 %v863, %v1161
        %v1174 = vadd.f32 %v864, %v1162
        %v1175 = vadd.f32 %v865, %v1163
        %v1176 = vadd.f32 %v866, %v1164
        %v1177 = vadd.f32 %v867, %v1165
        %v1178 = vadd.f32 %v868, %v1166
        %v1179 = vadd.f32 %v869, %v1167
        %v1180 = vadd.f32 %v870, %v1168
        %v1181 = vadd.f32 %v871, %v1169
        %v1182 = vadd.f32 %v872, %v1170
        %v1183 = vadd.f32 %v873, %v1171
        %v1184 = vadd.f32 %v874, %v1172
        %v1185 = vadd.f32 %v1173, %v1177
        %v1186 = vadd.f32 %v1185, %v1181
        %v1187 = vadd.f32 %v1174, %v1178
        %v1188 = vadd.f32 %v1187, %v1182
        %v1189 = vadd.f32 %v1175, %v1179
        %v1190 = vadd.f32 %v1189, %v1183
        %v1191 = vadd.f32 %v1176, %v1180
        %v1192 = vadd.f32 %v1191, %v1184
        %v1193 = vld [vmem:[%s326] sm:$0xff]
        %v1194 = vld [vmem:[%s326 + $0x8] sm:$0xff]
        %v1195 = vld [vmem:[%s326 + $0x10] sm:$0xff]
        %v1196 = vld [vmem:[%s326 + $0x18] sm:$0xff]
        %1198 = vset.pattern.permute.xlu0 0
        %1199 = vperm.xlu0 %1198, %v1193
        %v1200 = vpop.permute.xlu0 %1199
        %1203 = vset.pattern.permute.xlu0 0
        %1204 = vperm.xlu0 %1203, %v1194
        %v1205 = vpop.permute.xlu0 %1204
        %1208 = vset.pattern.permute.xlu0 0
        %1209 = vperm.xlu0 %1208, %v1195
        %v1210 = vpop.permute.xlu0 %1209
        %1213 = vset.pattern.permute.xlu0 0
        %1214 = vperm.xlu0 %1213, %v1196
        %v1215 = vpop.permute.xlu0 %1214
        %v1217 = vmul.f32 %v1200, %v1186
        %v1218 = vmul.f32 %v1205, %v1188
        %v1219 = vmul.f32 %v1210, %v1190
        %v1220 = vmul.f32 %v1215, %v1192
        %v1221 = vpack.c.bf16 %v1218, %v1217
        %v1222 = vpack.c.bf16 %v1220, %v1219
        %v1225 = vunpack.c.l.b16 %v1221
        %v1226 = vunpack.c.h.b16 %v1221
        %v1227 = vunpack.c.l.b16 %v1222
        %v1228 = vunpack.c.h.b16 %v1222
        %v1229 = vpack.c.b16 %v1225, %v1225
        %v1230 = vpack.c.b16 %v1226, %v1226
        %v1231 = vpack.c.b16 %v1227, %v1227
        %v1232 = vpack.c.b16 %v1228, %v1228
        %1237 = vst [vmem:[%s333] sm:$0xf] %v1229
        %1238 = vst [vmem:[%s333 + $0x4] sm:$0xf] %v1230
        %1239 = vst [vmem:[%s333 + $0x8] sm:$0xf] %v1231
        %1240 = vst [vmem:[%s333 + $0xc] sm:$0xf] %v1232
        %s1241 = smul.u32 4, %s16
        %p1242 = scmp.lt.s32.totalorder %s1241, 7
        %s1243 = scalar_select %p1242, %s1241, 7
        %s1244 = smul.addr %s1243, 4
        %s1245 = scalar_lea.vmem %s5, %s1244
        // Predicated region
        $region82: #{paraphraser_forward.1} parent=76 // pred_check
          %p1246 = pneg %p149
        $region83: #{paraphraser_forward.1} parent=76 // pred_check_branch
          %1248 = sbr.rel (%p1246) target = $region85
        $region84: #{paraphraser_forward.1} parent=76 // pred_region
          %s1249 = smul.u32 4, %s16
        $region85: #{paraphraser_forward.1} parent=76 // pred_fallthru
          _
      $region77: #{paraphraser_forward.1} parent=5 // pred_fallthru
        _
      %p1250 = scmp.le.s32.totalorder 2, %s11
      // Predicated region
      $region86: #{paraphraser_forward.1} parent=5 // pred_check
        %p1251 = pneg %p1250
      $region87: #{paraphraser_forward.1} parent=5 // pred_check_branch
        %1253 = sbr.rel (%p1251) target = $region89
      $region88: #{paraphraser_forward.1} parent=5 // pred_region
        %s1254 = ssub.s32 %s11, 2
        // Predicated region
        $region90: #{paraphraser_forward.1} parent=88 // pred_check
          %p1255 = pneg %p155
        $region91: #{paraphraser_forward.1} parent=88 // pred_check_branch
          %1257 = sbr.rel (%p1255) target = $region93
        $region92: #{paraphraser_forward.1} parent=88 // pred_region
          %s1258 = smul.u32 4, %s17
          %p1259 = scmp.lt.s32.totalorder %s1258, 7
          %s1260 = scalar_select %p1259, %s1258, 7
          %s1261 = smul.addr %s1260, 4
          %s1262 = scalar_lea.vmem %s5, %s1261
        $region93: #{paraphraser_forward.1} parent=88 // pred_fallthru
          _
      $region89: #{paraphraser_forward.1} parent=5 // pred_fallthru
        _
    $region6: #{paraphraser_forward.1} parent=1 // loop_footer
      %s15 = sadd.s32 1, %s11
    $region7: #{paraphraser_forward.1} parent=1 // loop_footer_branch
      %10 = sbr.rel target = $region3
    $region8: #{paraphraser_forward.1} parent=1 // loop_exit
      _

</llo_original>
